<compile_context>
chip_gen: v5e
topology: v5e:2x2
jax: 0.10.0
libtpu: 0.0.40
codegen_flags: <defaults>
</compile_context>

<pallas_src>
import numpy as np
import jax
import jax.numpy as jnp
from jax.experimental import pallas as pl
from jax.experimental.pallas import tpu as pltpu


# --------------------- fused conv + pool + relu + bn kernel -------------------
def _make_fused_kernel(b_t, hp, h2, g):
    def kernel(x_ref, w_ref, scale_ref, bias_ref, o_ref):
        # x_ref:     (B_t, H2, W2*4*Cin) f32   phase+width packed rows
        # w_ref:     (2, W2*4*Cin, 4*g)  bf16  block-Toeplitz weights per row offset
        # scale_ref: (1, g)              f32   folded BN scale (tiled over Wp cols)
        # bias_ref:  (1, g)              f32   folded BN bias  (tiled over Wp cols)
        # o_ref:     (B_t, Hp, g)        f32   pooled + ReLU + BN output slab
        w0 = w_ref[0]
        w1 = w_ref[1]
        scale = scale_ref[...]
        bias = bias_ref[...]
        for b in range(b_t):                      # static unroll over the batch tile
            xb = x_ref[b]                         # (H2, K) f32
            lhs0 = xb[0:hp, :].astype(jnp.bfloat16)   # packed rows i
            lhs1 = xb[1:h2, :].astype(jnp.bfloat16)   # packed rows i+1
            # conv as two wide MXU matmuls (bf16 in / f32 acc):
            # acc[i, corner*g + j*Cout + co] == conv(2i+a, 2j+b, co), corner = 2a+b
            acc = jnp.dot(lhs0, w0, preferred_element_type=jnp.float32)
            acc = acc + jnp.dot(lhs1, w1, preferred_element_type=jnp.float32)
            # 2x2 max-pool == max over the four pooling-corner lane groups.
            pooled = jnp.maximum(
                jnp.maximum(acc[:, 0:g], acc[:, g:2 * g]),
                jnp.maximum(acc[:, 2 * g:3 * g], acc[:, 3 * g:4 * g]))
            act = jnp.maximum(pooled, 0.0)                    # ReLU
            o_ref[b] = act * scale + bias                     # BatchNorm (folded, eval)
    return kernel


# ------------------------------- wrapper --------------------------------------
def conv_neck_block(x_nchw, w_oihw, gamma, beta, run_mean, run_var,
                    eps=1e-5, batch_tile=None):
    # Implements the pool=True configuration of ConvNeckBlock.
    N, Cin, H, W = x_nchw.shape
    Cout = w_oihw.shape[0]
    assert H % 2 == 0 and W % 2 == 0 and H >= 4 and W >= 4, \
        "phase-decomposed kernel assumes even H, W and at least one pooled output"
    H2, W2 = H // 2, W // 2
    Hp, Wp = (H - 2) // 2, (W - 2) // 2        # pooled output size (== H2-1, W2-1)
    K = W2 * 4 * Cin                           # packed-row lane width
    g = Wp * Cout                              # output lanes per pooling corner

    # ---- batch tiling: amortize per-step overhead, keep >=2 steps when possible --
    if batch_tile is None:
        batch_tile = max(1, min(8, N // 4))
    n_steps = -(-N // batch_tile)
    Np = n_steps * batch_tile

    # ---- glue (1x traffic): NCHW -> phase+width packed (N, H2, W2*4*Cin) --------
    # lane index = j*4*Cin + (2*pa + pb)*Cin + ci  for pixel (2i+pa, 2j+pb, ci)
    x = jnp.transpose(x_nchw, (0, 2, 3, 1)).astype(jnp.float32)   # (N,H,W,Cin)
    x = x.reshape(N, H2, 2, W2, 2, Cin)
    x = jnp.transpose(x, (0, 1, 3, 2, 4, 5))                      # (N,H2,W2,pa,pb,Cin)
    x_ph = x.reshape(N, H2, K)
    if Np != N:
        x_ph = jnp.pad(x_ph, ((0, Np - N), (0, 0), (0, 0)))

    # ---- block-Toeplitz packed weights: (2 row-offsets, K, 4 corners * Wp * Cout) --
    # Placement mask built once in numpy (trace-time constant), combined with the
    # conv weight by a single einsum.  Each (dy,dx) tap lands at a unique slot.
    P = np.zeros((2, W2 * 4, 4 * Wp, 3, 3), np.float32)
    for a in range(2):
        for b in range(2):
            corner = 2 * a + b
            for dy in range(3):
                ro, pa = divmod(a + dy, 2)
                for dx in range(3):
                    cb, pb = divmod(b + dx, 2)
                    q = 2 * pa + pb
                    for j in range(Wp):
                        P[ro, (j + cb) * 4 + q, corner * Wp + j, dy, dx] = 1.0
    w_hwio = jnp.transpose(w_oihw.astype(jnp.float32), (2, 3, 1, 0))  # (3,3,Cin,Cout)
    w_pack = jnp.einsum('rkcyx,yxio->rkico', jnp.asarray(P), w_hwio)
    w_pack = w_pack.reshape(2, K, 4 * g).astype(jnp.bfloat16)         # bf16 MXU operand

    # ---- fold BatchNorm (eval mode) into per-channel scale/bias, tiled over Wp ----
    inv_std = 1.0 / jnp.sqrt(run_var.astype(jnp.float32) + eps)
    scale = gamma.astype(jnp.float32) * inv_std
    bias = beta.astype(jnp.float32) - run_mean.astype(jnp.float32) * scale
    scale_t = jnp.tile(scale, Wp).reshape(1, g)
    bias_t = jnp.tile(bias, Wp).reshape(1, g)

    kernel = _make_fused_kernel(batch_tile, Hp, H2, g)
    out = pl.pallas_call(
        kernel,
        out_shape=jax.ShapeDtypeStruct((Np, Hp, g), jnp.float32),
        grid=(n_steps,),
        in_specs=[
            pl.BlockSpec((batch_tile, H2, K), lambda s: (s, 0, 0)),
            pl.BlockSpec((2, K, 4 * g), lambda s: (0, 0, 0)),   # VMEM-resident
            pl.BlockSpec((1, g), lambda s: (0, 0)),             # VMEM-resident
            pl.BlockSpec((1, g), lambda s: (0, 0)),             # VMEM-resident
        ],
        out_specs=pl.BlockSpec((batch_tile, Hp, g), lambda s: (s, 0, 0)),
        compiler_params=pltpu.CompilerParams(
            dimension_semantics=("parallel",),       # shard batch tiles across TCs
            vmem_limit_bytes=32 * 1024 * 1024,
        ),
    )(x_ph, w_pack, scale_t, bias_t)

    # ---- glue: back to NCHW (a consumer could instead take the pooled slab) ----
    out = out[:N].reshape(N, Hp, Wp, Cout)
    return jnp.transpose(out, (0, 3, 1, 2))


# --------------------------- pure-JAX reference --------------------------------
def _reference(x, w, gamma, beta, mean, var, eps=1e-5):
    conv = jax.lax.conv_general_dilated(
        x, w, window_strides=(1, 1), padding='VALID',
        dimension_numbers=('NCHW', 'OIHW', 'NCHW'))
    pooled = jax.lax.reduce_window(conv, -jnp.inf, jax.lax.max,
                                   window_dimensions=(1, 1, 2, 2),
                                   window_strides=(1, 1, 2, 2),
                                   padding='VALID')
    act = jnp.maximum(pooled, 0.0)
    inv = (1.0 / jnp.sqrt(var + eps))[None, :, None, None]
    return (act - mean[None, :, None, None]) * inv \
        * gamma[None, :, None, None] + beta[None, :, None, None]


if __name__ == "__main__":
    key = jax.random.PRNGKey(0)
    k1, k2, k3, k4, k5, k6 = jax.random.split(key, 6)

    N, Cin, H, W = 2, 4, 16, 16
    Cout = 8

    x = jax.random.normal(k1, (N, Cin, H, W), jnp.float32)
    w = 0.1 * jax.random.normal(k2, (Cout, Cin, 3, 3), jnp.float32)
    gamma = 1.0 + 0.1 * jax.random.normal(k3, (Cout,), jnp.float32)
    beta = 0.1 * jax.random.normal(k4, (Cout,), jnp.float32)
    run_mean = 0.1 * jax.random.normal(k5, (Cout,), jnp.float32)
    run_var = jnp.abs(jax.random.normal(k6, (Cout,), jnp.float32)) + 0.5

    out = conv_neck_block(x, w, gamma, beta, run_mean, run_var)
    out = jax.block_until_ready(out)

    ref = _reference(x, w, gamma, beta, run_mean, run_var)
    assert out.shape == (N, Cout, (H - 2) // 2, (W - 2) // 2), out.shape
    # bf16 MXU operands vs. f32 reference -> loosened tolerance.
    assert jnp.allclose(out, ref, atol=5e-2, rtol=5e-2), \
        float(jnp.max(jnp.abs(out - ref)))

    print("KERNEL_OK")
</pallas_src>

<mosaic_0001>
module attributes {stable_mosaic.version = 11 : i64} {
  func.func @kernel(%arg0: i32, %arg1: memref<1x8x128xf32, #tpu.memory_space<vmem>>, %arg2: memref<2x128x224xbf16, #tpu.memory_space<vmem>>, %arg3: memref<1x56xf32, #tpu.memory_space<vmem>>, %arg4: memref<1x56xf32, #tpu.memory_space<vmem>>, %arg5: memref<1x7x56xf32, #tpu.memory_space<vmem>>) attributes {dimension_semantics = [#tpu.dimension_semantics<parallel>], iteration_bounds = array<i64: 2>, scalar_prefetch = 0 : i64, scratch_operands = 0 : i64, tpu.core_type = #tpu.core_type<tc>, window_params = [{transform_indices = @transform_0, window_bounds = array<i64: 1, 8, 128>}, {pipeline_mode = #tpu.pipeline_mode<synchronous>, transform_indices = @transform_1, window_bounds = array<i64: 2, 128, 224>}, {pipeline_mode = #tpu.pipeline_mode<synchronous>, transform_indices = @transform_2, window_bounds = array<i64: 1, 56>}, {pipeline_mode = #tpu.pipeline_mode<synchronous>, transform_indices = @transform_3, window_bounds = array<i64: 1, 56>}, {transform_indices = @transform_4, window_bounds = array<i64: 1, 7, 56>}]} {
    %c0 = arith.constant 0 : index
    %c0_0 = arith.constant 0 : index
    %c0_1 = arith.constant 0 : index
    %0 = vector.load %arg2[%c0, %c0_0, %c0_1] : memref<2x128x224xbf16, #tpu.memory_space<vmem>>, vector<1x128x224xbf16>
    %1 = vector.shape_cast %0 : vector<1x128x224xbf16> to vector<128x224xbf16>
    %c1 = arith.constant 1 : index
    %c0_2 = arith.constant 0 : index
    %c0_3 = arith.constant 0 : index
    %2 = vector.load %arg2[%c1, %c0_2, %c0_3] : memref<2x128x224xbf16, #tpu.memory_space<vmem>>, vector<1x128x224xbf16>
    %3 = vector.shape_cast %2 : vector<1x128x224xbf16> to vector<128x224xbf16>
    %c0_4 = arith.constant 0 : index
    %c0_5 = arith.constant 0 : index
    %4 = vector.load %arg3[%c0_4, %c0_5] : memref<1x56xf32, #tpu.memory_space<vmem>>, vector<1x56xf32>
    %c0_6 = arith.constant 0 : index
    %c0_7 = arith.constant 0 : index
    %5 = vector.load %arg4[%c0_6, %c0_7] : memref<1x56xf32, #tpu.memory_space<vmem>>, vector<1x56xf32>
    %c0_8 = arith.constant 0 : index
    %c0_9 = arith.constant 0 : index
    %c0_10 = arith.constant 0 : index
    %6 = vector.load %arg1[%c0_8, %c0_9, %c0_10] : memref<1x8x128xf32, #tpu.memory_space<vmem>>, vector<1x8x128xf32>
    %7 = vector.shape_cast %6 : vector<1x8x128xf32> to vector<8x128xf32>
    %8 = vector.extract_strided_slice %7 {offsets = [0, 0], sizes = [7, 128], strides = [1, 1]} : vector<8x128xf32> to vector<7x128xf32>
    %9 = arith.truncf %8 : vector<7x128xf32> to vector<7x128xbf16>
    %10 = vector.extract_strided_slice %7 {offsets = [1, 0], sizes = [7, 128], strides = [1, 1]} : vector<8x128xf32> to vector<7x128xf32>
    %11 = arith.truncf %10 : vector<7x128xf32> to vector<7x128xbf16>
    %cst = arith.constant dense<0.000000e+00> : vector<7x224xf32>
    %12 = tpu.matmul %9, %1, %cst {dimension_numbers = #tpu.dot_dimension_numbers<[1], [0], [0], [1], [0, 0, 1, 1], [], []>} : vector<7x128xbf16>, vector<128x224xbf16>, vector<7x224xf32> -> vector<7x224xf32>
    %cst_11 = arith.constant dense<0.000000e+00> : vector<7x224xf32>
    %13 = tpu.matmul %11, %3, %cst_11 {dimension_numbers = #tpu.dot_dimension_numbers<[1], [0], [0], [1], [0, 0, 1, 1], [], []>} : vector<7x128xbf16>, vector<128x224xbf16>, vector<7x224xf32> -> vector<7x224xf32>
    %14 = arith.addf %12, %13 : vector<7x224xf32>
    %15 = vector.extract_strided_slice %14 {offsets = [0, 0], sizes = [7, 56], strides = [1, 1]} : vector<7x224xf32> to vector<7x56xf32>
    %16 = vector.extract_strided_slice %14 {offsets = [0, 56], sizes = [7, 56], strides = [1, 1]} : vector<7x224xf32> to vector<7x56xf32>
    %17 = arith.maximumf %15, %16 : vector<7x56xf32>
    %18 = vector.extract_strided_slice %14 {offsets = [0, 112], sizes = [7, 56], strides = [1, 1]} : vector<7x224xf32> to vector<7x56xf32>
    %19 = vector.extract_strided_slice %14 {offsets = [0, 168], sizes = [7, 56], strides = [1, 1]} : vector<7x224xf32> to vector<7x56xf32>
    %20 = arith.maximumf %18, %19 : vector<7x56xf32>
    %21 = arith.maximumf %17, %20 : vector<7x56xf32>
    %cst_12 = arith.constant 0.000000e+00 : f32
    %22 = vector.broadcast %cst_12 : f32 to vector<7x56xf32>
    %23 = arith.maximumf %21, %22 : vector<7x56xf32>
    %24 = vector.broadcast %4 : vector<1x56xf32> to vector<7x56xf32>
    %25 = arith.mulf %23, %24 : vector<7x56xf32>
    %26 = vector.broadcast %5 : vector<1x56xf32> to vector<7x56xf32>
    %27 = arith.addf %25, %26 : vector<7x56xf32>
    %c0_13 = arith.constant 0 : index
    %c0_14 = arith.constant 0 : index
    %c0_15 = arith.constant 0 : index
    %28 = vector.load %arg5[%c0_13, %c0_14, %c0_15] : memref<1x7x56xf32, #tpu.memory_space<vmem>>, vector<1x7x56xf32>
    %29 = vector.shape_cast %28 : vector<1x7x56xf32> to vector<7x56xf32>
    %30 = vector.shape_cast %27 : vector<7x56xf32> to vector<1x7x56xf32>
    tpu.vector_store %arg5[%c0_13, %c0_14, %c0_15], %30 {strides = array<i32>} : memref<1x7x56xf32, #tpu.memory_space<vmem>>, vector<1x7x56xf32>,
    return
  }
  func.func @transform_0(%arg0: i32) -> (i32, i32, i32) {
    %c0_i32 = arith.constant 0 : i32
    %c0_i32_0 = arith.constant 0 : i32
    %c0_i32_1 = arith.constant 0 : i32
    return %arg0, %c0_i32, %c0_i32_0 : i32, i32, i32
  }
  func.func @transform_1(%arg0: i32) -> (i32, i32, i32) {
    %c0_i32 = arith.constant 0 : i32
    %c0_i32_0 = arith.constant 0 : i32
    %c0_i32_1 = arith.constant 0 : i32
    %c0_i32_2 = arith.constant 0 : i32
    return %c0_i32, %c0_i32_0, %c0_i32_1 : i32, i32, i32
  }
  func.func @transform_2(%arg0: i32) -> (i32, i32) {
    %c0_i32 = arith.constant 0 : i32
    %c0_i32_0 = arith.constant 0 : i32
    %c0_i32_1 = arith.constant 0 : i32
    return %c0_i32, %c0_i32_0 : i32, i32
  }
  func.func @transform_3(%arg0: i32) -> (i32, i32) {
    %c0_i32 = arith.constant 0 : i32
    %c0_i32_0 = arith.constant 0 : i32
    %c0_i32_1 = arith.constant 0 : i32
    return %c0_i32, %c0_i32_0 : i32, i32
  }
  func.func @transform_4(%arg0: i32) -> (i32, i32, i32) {
    %c0_i32 = arith.constant 0 : i32
    %c0_i32_0 = arith.constant 0 : i32
    %c0_i32_1 = arith.constant 0 : i32
    return %arg0, %c0_i32, %c0_i32_0 : i32, i32, i32
  }
}

</mosaic_0001>

<llo_original>
// kernel: tpu_custom_call.1
$region0: #{tpu_custom_call.1}
  #allocation0 [shape = 'u32[]', space=smem, size = 0x4, offset = 0x4, fixed_abs, tag = 'smem constant byte address 0x4 - core index']
  #allocation1 [shape = 'u32[72,128]{1,0:T(1,128)}', space=vmem, size = 0x9000, scoped, tag = 'internal scratch']
  %s0 = inlined_call_operand.vmem [shape: f32[2,8,128], index: 0, kind: input, shape index: {}]
  %s1 = inlined_call_operand.vmem [shape: bf16[2,128,224], index: 1, kind: input, shape index: {}]
  %s2 = inlined_call_operand.vmem [shape: f32[1,56], index: 2, kind: input, shape index: {}]
  %s3 = inlined_call_operand.vmem [shape: f32[1,56], index: 3, kind: input, shape index: {}]
  %s4 = inlined_call_operand.vmem [shape: f32[2,7,56], index: 4, kind: output, shape index: {}]
  %s5 = sld [smem:[#allocation0]]
  $region49: #{tpu_custom_call.1} parent=0
    _
  %s7 = ssub.s32 1, %s5
  %s8 = scalar_select 0, %s7, %s5
  loop: start=0, step=1, limit=4
  $region2: #{tpu_custom_call.1} parent=0 // loop_pre_header
    _
  $region3: #{tpu_custom_call.1} parent=0 // loop_header
    %s10 = sphi 0, %s14
    %p11 = scmp.ge.s32.totalorder %s10, 4
    %s20 = sphi 0, %s22
    %s23 = sphi 0, %s20
    %s24 = sphi 0, %s23
    %s40 = sphi 0, %s24
    %s44 = sphi 0, %s44
    %s46 = sphi 0, %s44
    %s47 = sphi 0, %s46
    %s61 = sphi 0, %s47
    %s65 = sphi 0, %s65
    %s67 = sphi 0, %s65
    %s68 = sphi 0, %s67
    %s82 = sphi 0, %s68
    %s86 = sphi 0, %s86
    %s88 = sphi 0, %s86
    %s89 = sphi 0, %s88
    %s103 = sphi 0, %s89
    %s109 = sphi 0, %s111
    %s112 = sphi 0, %s109
    %s113 = sphi 0, %s112
    %s129 = sphi 0, %s113
  $region4: #{tpu_custom_call.1} parent=0 // loop_header_branch
    %13 = sbr.rel (%p11) target = $region8
  $region5: #{tpu_custom_call.1} parent=0 // loop_body
    %s15 = ssub.s32 %s10, 1
    %s16 = ssub.s32 %s10, 2
    %s17 = sadd.s32 %s10, 1
    %s18 = ssub.s32 %s10, %s17
    %p19 = scmp.eq.s32.totalorder %s18, 0
    %s21 = sadd.s32 %s20, 1
    %s22 = scalar_select %p19, %s20, %s21
    %p25 = pneg %p19
    %p26 = scmp.eq.s32.totalorder %s10, 1
    %p27 = por %p25, %p26
    %p28 = scmp.ne.s32.totalorder %s20, %s23
    %p29 = scmp.eq.s32.totalorder %s10, 0
    %p30 = por %p28, %p29
    %p31 = scmp.ne.s32.totalorder %s20, %s23
    %p32 = scmp.eq.s32.totalorder %s15, 1
    %p33 = por %p31, %p32
    %p34 = scmp.ne.s32.totalorder %s23, %s24
    %p35 = scmp.eq.s32.totalorder %s15, 0
    %p36 = por %p34, %p35
    %p37 = scmp.ne.s32.totalorder %s23, %s24
    %p38 = scmp.eq.s32.totalorder %s16, 1
    %p39 = por %p37, %p38
    %p41 = scmp.ne.s32.totalorder %s24, %s40
    %p42 = scmp.eq.s32.totalorder %s16, 0
    %p43 = por %p41, %p42
    %s45 = sadd.s32 %s44, 1
    %p48 = scmp.eq.s32.totalorder %s10, 1
    %p49 = scmp.ne.s32.totalorder %s44, %s46
    %p50 = scmp.eq.s32.totalorder %s10, 0
    %p51 = por %p49, %p50
    %p52 = scmp.ne.s32.totalorder %s44, %s46
    %p53 = scmp.eq.s32.totalorder %s15, 1
    %p54 = por %p52, %p53
    %p55 = scmp.ne.s32.totalorder %s46, %s47
    %p56 = scmp.eq.s32.totalorder %s15, 0
    %p57 = por %p55, %p56
    %p58 = scmp.ne.s32.totalorder %s46, %s47
    %p59 = scmp.eq.s32.totalorder %s16, 1
    %p60 = por %p58, %p59
    %p62 = scmp.ne.s32.totalorder %s47, %s61
    %p63 = scmp.eq.s32.totalorder %s16, 0
    %p64 = por %p62, %p63
    %s66 = sadd.s32 %s65, 1
    %p69 = scmp.eq.s32.totalorder %s10, 1
    %p70 = scmp.ne.s32.totalorder %s65, %s67
    %p71 = scmp.eq.s32.totalorder %s10, 0
    %p72 = por %p70, %p71
    %p73 = scmp.ne.s32.totalorder %s65, %s67
    %p74 = scmp.eq.s32.totalorder %s15, 1
    %p75 = por %p73, %p74
    %p76 = scmp.ne.s32.totalorder %s67, %s68
    %p77 = scmp.eq.s32.totalorder %s15, 0
    %p78 = por %p76, %p77
    %p79 = scmp.ne.s32.totalorder %s67, %s68
    %p80 = scmp.eq.s32.totalorder %s16, 1
    %p81 = por %p79, %p80
    %p83 = scmp.ne.s32.totalorder %s68, %s82
    %p84 = scmp.eq.s32.totalorder %s16, 0
    %p85 = por %p83, %p84
    %s87 = sadd.s32 %s86, 1
    %p90 = scmp.eq.s32.totalorder %s10, 1
    %p91 = scmp.ne.s32.totalorder %s86, %s88
    %p92 = scmp.eq.s32.totalorder %s10, 0
    %p93 = por %p91, %p92
    %p94 = scmp.ne.s32.totalorder %s86, %s88
    %p95 = scmp.eq.s32.totalorder %s15, 1
    %p96 = por %p94, %p95
    %p97 = scmp.ne.s32.totalorder %s88, %s89
    %p98 = scmp.eq.s32.totalorder %s15, 0
    %p99 = por %p97, %p98
    %p100 = scmp.ne.s32.totalorder %s88, %s89
    %p101 = scmp.eq.s32.totalorder %s16, 1
    %p102 = por %p100, %p101
    %p104 = scmp.ne.s32.totalorder %s89, %s103
    %p105 = scmp.eq.s32.totalorder %s16, 0
    %p106 = por %p104, %p105
    %s107 = ssub.s32 %s10, %s17
    %p108 = scmp.eq.s32.totalorder %s107, 0
    %s110 = sadd.s32 %s109, 1
    %s111 = scalar_select %p108, %s109, %s110
    %p114 = pneg %p108
    %p115 = scmp.eq.s32.totalorder %s10, 1
    %p116 = por %p114, %p115
    %p117 = scmp.ne.s32.totalorder %s109, %s112
    %p118 = scmp.eq.s32.totalorder %s10, 0
    %p119 = por %p117, %p118
    %p120 = scmp.ne.s32.totalorder %s109, %s112
    %p121 = scmp.eq.s32.totalorder %s15, 1
    %p122 = por %p120, %p121
    %p123 = scmp.ne.s32.totalorder %s112, %s113
    %p124 = scmp.eq.s32.totalorder %s15, 0
    %p125 = por %p123, %p124
    %p126 = scmp.ne.s32.totalorder %s112, %s113
    %p127 = scmp.eq.s32.totalorder %s16, 1
    %p128 = por %p126, %p127
    %p130 = scmp.ne.s32.totalorder %s113, %s129
    %p131 = scmp.eq.s32.totalorder %s16, 0
    %p132 = por %p130, %p131
    %p133 = scmp.le.s32.totalorder 1, %s10
    %p134 = scmp.lt.s32.totalorder %s10, 3
    %p135 = pnand %p133, %p134
    %p136 = pneg %p135
    // Predicated region
    $region9: #{tpu_custom_call.1} parent=5 // pred_check
      _
    $region10: #{tpu_custom_call.1} parent=5 // pred_check_branch
      %138 = sbr.rel (%p135) target = $region12
    $region11: #{tpu_custom_call.1} parent=5 // pred_region
      %s139 = ssub.s32 %s10, 1
      // Predicated region
      $region13: #{tpu_custom_call.1} parent=11 // pred_check
        %p140 = pneg %p57
      $region14: #{tpu_custom_call.1} parent=11 // pred_check_branch
        %142 = sbr.rel (%p140) target = $region16
      $region15: #{tpu_custom_call.1} parent=11 // pred_region
        _
      $region16: #{tpu_custom_call.1} parent=11 // pred_fallthru
        _
      // Predicated region
      $region17: #{tpu_custom_call.1} parent=11 // pred_check
        %p143 = pneg %p78
      $region18: #{tpu_custom_call.1} parent=11 // pred_check_branch
        %145 = sbr.rel (%p143) target = $region20
      $region19: #{tpu_custom_call.1} parent=11 // pred_region
        _
      $region20: #{tpu_custom_call.1} parent=11 // pred_fallthru
        _
      // Predicated region
      $region21: #{tpu_custom_call.1} parent=11 // pred_check
        %p146 = pneg %p99
      $region22: #{tpu_custom_call.1} parent=11 // pred_check_branch
        %148 = sbr.rel (%p146) target = $region24
      $region23: #{tpu_custom_call.1} parent=11 // pred_region
        _
      $region24: #{tpu_custom_call.1} parent=11 // pred_fallthru
        _
    $region12: #{tpu_custom_call.1} parent=5 // pred_fallthru
      _
    %p149 = scmp.lt.s32.totalorder %s10, 2
    // Predicated region
    $region25: #{tpu_custom_call.1} parent=5 // pred_check
      %p150 = pneg %p149
    $region26: #{tpu_custom_call.1} parent=5 // pred_check_branch
      %152 = sbr.rel (%p150) target = $region28
    $region27: #{tpu_custom_call.1} parent=5 // pred_region
      // Predicated region
      $region29: #{tpu_custom_call.1} parent=27 // pred_check
        %p153 = pneg %p30
      $region30: #{tpu_custom_call.1} parent=27 // pred_check_branch
        %155 = sbr.rel (%p153) target = $region32
      $region31: #{tpu_custom_call.1} parent=27 // pred_region
        %p156 = scmp.lt.s32.totalorder %s10, 1
        %s157 = scalar_select %p156, %s10, 1
        %s158 = smul.addr %s157, 8
        %s159 = scalar_lea.vmem %s0, %s158
      $region32: #{tpu_custom_call.1} parent=27 // pred_fallthru
        _
    $region28: #{tpu_custom_call.1} parent=5 // pred_fallthru
      _
    %p160 = scmp.le.s32.totalorder 1, %s10
    %p161 = scmp.lt.s32.totalorder %s10, 3
    %p162 = pnand %p160, %p161
    %p163 = pneg %p162
    // Predicated region
    $region33: #{tpu_custom_call.1} parent=5 // pred_check
      _
    $region34: #{tpu_custom_call.1} parent=5 // pred_check_branch
      %165 = sbr.rel (%p162) target = $region36
    $region35: #{tpu_custom_call.1} parent=5 // pred_region
      %s166 = ssub.s32 %s10, 1
      %p167 = scmp.lt.s32.totalorder %s15, 1
      %s168 = scalar_select %p167, %s15, 1
      %s169 = smul.addr %s168, 8
      %s170 = scalar_lea.vmem %s0, %s169
      %p171 = pneg %p36
      %p172 = pneg %p33
      %p173 = pneg %p57
      %p174 = pneg %p54
      %p175 = pneg %p78
      %p176 = pneg %p75
      %p177 = pneg %p99
      %p178 = pneg %p96
      %p179 = pneg %p125
      %p180 = pneg %p122
      %p181 = scmp.lt.s32.totalorder %s15, 1
      %s182 = scalar_select %p181, %s15, 1
      %s183 = smul.addr %s182, 8
      %s184 = scalar_lea.vmem %s4, %s183
      %p185 = scmp.lt.s32.totalorder %s15, 1
      %s186 = scalar_select %p185, %s15, 1
      %s187 = smul.addr %s186, 8
      %s188 = scalar_lea.vmem %s0, %s187
      %p189 = scmp.lt.s32.totalorder %s15, 1
      %s190 = scalar_select %p189, %s15, 1
      %s191 = smul.addr %s190, 8
      %s192 = scalar_lea.vmem %s4, %s191
      %v193 = vld [vmem:[%s1] sm:$0xff]
      %v194 = vld [vmem:[%s1 + $0x8] sm:$0xff]
      %v195 = vld [vmem:[%s1 + $0x10] sm:$0xff]
      %v196 = vld [vmem:[%s1 + $0x18] sm:$0xff]
      %v197 = vld [vmem:[%s1 + $0x20] sm:$0xff]
      %v198 = vld [vmem:[%s1 + $0x28] sm:$0xff]
      %v199 = vld [vmem:[%s1 + $0x30] sm:$0xff]
      %v200 = vld [vmem:[%s1 + $0x38] sm:$0xff]
      %v201 = vld [vmem:[%s1 + $0x40] sm:$0xff]
      %v202 = vld [vmem:[%s1 + $0x48] sm:$0xff]
      %v203 = vld [vmem:[%s1 + $0x50] sm:$0xff]
      %v204 = vld [vmem:[%s1 + $0x58] sm:$0xff]
      %v205 = vld [vmem:[%s1 + $0x60] sm:$0xff]
      %v206 = vld [vmem:[%s1 + $0x68] sm:$0xff]
      %v207 = vld [vmem:[%s1 + $0x70] sm:$0xff]
      %v208 = vld [vmem:[%s1 + $0x78] sm:$0xff]
      %s209 = scalar_lea.vmem %s1, 128
      %v210 = vld [vmem:[%s209] sm:$0xff]
      %v211 = vld [vmem:[%s209 + $0x8] sm:$0xff]
      %v212 = vld [vmem:[%s209 + $0x10] sm:$0xff]
      %v213 = vld [vmem:[%s209 + $0x18] sm:$0xff]
      %v214 = vld [vmem:[%s209 + $0x20] sm:$0xff]
      %v215 = vld [vmem:[%s209 + $0x28] sm:$0xff]
      %v216 = vld [vmem:[%s209 + $0x30] sm:$0xff]
      %v217 = vld [vmem:[%s209 + $0x38] sm:$0xff]
      %v218 = vld [vmem:[%s209 + $0x40] sm:$0xff]
      %v219 = vld [vmem:[%s209 + $0x48] sm:$0xff]
      %v220 = vld [vmem:[%s209 + $0x50] sm:$0xff]
      %v221 = vld [vmem:[%s209 + $0x58] sm:$0xff]
      %v222 = vld [vmem:[%s209 + $0x60] sm:$0xff]
      %v223 = vld [vmem:[%s209 + $0x68] sm:$0xff]
      %v224 = vld [vmem:[%s209 + $0x70] sm:$0xff]
      %v225 = vld [vmem:[%s209 + $0x78] sm:$0xff]
      %v226 = vld [vmem:[%s2] sm:$0x1]
      %v227 = vld [vmem:[%s3] sm:$0x1]
      %v228 = vld [vmem:[%s188] sm:$0xff]
      %v229 = vpack.c.bf16 %v228, %v228
      %v231 = vshrl.u32 %v229, 16
      %v233 = vshll.u32 %v229, 16
      %v235 = vrot.slane %v233, 1
      %v236 = vor.u32 %v231, %v235
      %v254 = vunpack.c.l.b16 %v210
      %v255 = vunpack.c.h.b16 %v210
      %v256 = vunpack.c.l.b16 %v211
      %v257 = vunpack.c.h.b16 %v211
      %v258 = vunpack.c.l.b16 %v212
      %v259 = vunpack.c.h.b16 %v212
      %v260 = vunpack.c.l.b16 %v213
      %v261 = vunpack.c.h.b16 %v213
      %v262 = vunpack.c.l.b16 %v214
      %v263 = vunpack.c.h.b16 %v214
      %v264 = vunpack.c.l.b16 %v215
      %v265 = vunpack.c.h.b16 %v215
      %v266 = vunpack.c.l.b16 %v216
      %v267 = vunpack.c.h.b16 %v216
      %v268 = vunpack.c.l.b16 %v217
      %v269 = vunpack.c.h.b16 %v217
      %v270 = vunpack.c.l.b16 %v218
      %v271 = vunpack.c.h.b16 %v218
      %v272 = vunpack.c.l.b16 %v219
      %v273 = vunpack.c.h.b16 %v219
      %v274 = vunpack.c.l.b16 %v220
      %v275 = vunpack.c.h.b16 %v220
      %v276 = vunpack.c.l.b16 %v221
      %v277 = vunpack.c.h.b16 %v221
      %v278 = vunpack.c.l.b16 %v222
      %v279 = vunpack.c.h.b16 %v222
      %v280 = vunpack.c.l.b16 %v223
      %v281 = vunpack.c.h.b16 %v223
      %v282 = vunpack.c.l.b16 %v224
      %v283 = vunpack.c.h.b16 %v224
      %v284 = vunpack.c.l.b16 %v225
      %v285 = vunpack.c.h.b16 %v225
      %v286 = vpack.c.b16 %v256, %v254
      %v287 = vpack.c.b16 %v257, %v255
      %v288 = vpack.c.b16 %v260, %v258
      %v289 = vpack.c.b16 %v261, %v259
      %v290 = vpack.c.b16 %v264, %v262
      %v291 = vpack.c.b16 %v265, %v263
      %v292 = vpack.c.b16 %v268, %v266
      %v293 = vpack.c.b16 %v269, %v267
      %v294 = vpack.c.b16 %v272, %v270
      %v295 = vpack.c.b16 %v273, %v271
      %v296 = vpack.c.b16 %v276, %v274
      %v297 = vpack.c.b16 %v277, %v275
      %v298 = vpack.c.b16 %v280, %v278
      %v299 = vpack.c.b16 %v281, %v279
      %v300 = vpack.c.b16 %v284, %v282
      %v301 = vpack.c.b16 %v285, %v283
      %318 = vmatpush.bf16.msra.mxu0 %v300
      %319 = vmatpush.bf16.msra.mxu0 %v298
      %320 = vmatpush.bf16.msra.mxu0 %v296
      %321 = vmatpush.bf16.msra.mxu0 %v294
      %322 = vmatpush.bf16.msra.mxu0 %v292
      %323 = vmatpush.bf16.msra.mxu0 %v290
      %324 = vmatpush.bf16.msra.mxu0 %v288
      %325 = vmatpush.bf16.msra.mxu0 %v286
      %326 = vmatmul.bf16.gmra.mxu0 %v236
      %v327 = vpop.f32.mrf.mxu0
      %v328 = vadd.f32 0.0, %v327
      %v329 = vpop.f32.mrf.mxu0
      %330 = vdwg.mxu0
      %331 = vmatpush.bf16.msra.mxu0 %v301
      %332 = vmatpush.bf16.msra.mxu0 %v299
      %333 = vmatpush.bf16.msra.mxu0 %v297
      %334 = vmatpush.bf16.msra.mxu0 %v295
      %335 = vmatpush.bf16.msra.mxu0 %v293
      %336 = vmatpush.bf16.msra.mxu0 %v291
      %337 = vmatpush.bf16.msra.mxu0 %v289
      %338 = vmatpush.bf16.msra.mxu0 %v287
      %339 = vmatmul.bf16.gmra.mxu0 %v236
      %v340 = vpop.f32.mrf.mxu0
      %v341 = vadd.f32 0.0, %v340
      %v342 = vpop.f32.mrf.mxu0
      %343 = vdwg.mxu0
      %v360 = vunpack.c.l.b16 %v193
      %v361 = vunpack.c.h.b16 %v193
      %v362 = vunpack.c.l.b16 %v194
      %v363 = vunpack.c.h.b16 %v194
      %v364 = vunpack.c.l.b16 %v195
      %v365 = vunpack.c.h.b16 %v195
      %v366 = vunpack.c.l.b16 %v196
      %v367 = vunpack.c.h.b16 %v196
      %v368 = vunpack.c.l.b16 %v197
      %v369 = vunpack.c.h.b16 %v197
      %v370 = vunpack.c.l.b16 %v198
      %v371 = vunpack.c.h.b16 %v198
      %v372 = vunpack.c.l.b16 %v199
      %v373 = vunpack.c.h.b16 %v199
      %v374 = vunpack.c.l.b16 %v200
      %v375 = vunpack.c.h.b16 %v200
      %v376 = vunpack.c.l.b16 %v201
      %v377 = vunpack.c.h.b16 %v201
      %v378 = vunpack.c.l.b16 %v202
      %v379 = vunpack.c.h.b16 %v202
      %v380 = vunpack.c.l.b16 %v203
      %v381 = vunpack.c.h.b16 %v203
      %v382 = vunpack.c.l.b16 %v204
      %v383 = vunpack.c.h.b16 %v204
      %v384 = vunpack.c.l.b16 %v205
      %v385 = vunpack.c.h.b16 %v205
      %v386 = vunpack.c.l.b16 %v206
      %v387 = vunpack.c.h.b16 %v206
      %v388 = vunpack.c.l.b16 %v207
      %v389 = vunpack.c.h.b16 %v207
      %v390 = vunpack.c.l.b16 %v208
      %v391 = vunpack.c.h.b16 %v208
      %v392 = vpack.c.b16 %v362, %v360
      %v393 = vpack.c.b16 %v363, %v361
      %v394 = vpack.c.b16 %v366, %v364
      %v395 = vpack.c.b16 %v367, %v365
      %v396 = vpack.c.b16 %v370, %v368
      %v397 = vpack.c.b16 %v371, %v369
      %v398 = vpack.c.b16 %v374, %v372
      %v399 = vpack.c.b16 %v375, %v373
      %v400 = vpack.c.b16 %v378, %v376
      %v401 = vpack.c.b16 %v379, %v377
      %v402 = vpack.c.b16 %v382, %v380
      %v403 = vpack.c.b16 %v383, %v381
      %v404 = vpack.c.b16 %v386, %v384
      %v405 = vpack.c.b16 %v387, %v385
      %v406 = vpack.c.b16 %v390, %v388
      %v407 = vpack.c.b16 %v391, %v389
      %424 = vmatpush.bf16.msra.mxu0 %v406
      %425 = vmatpush.bf16.msra.mxu0 %v404
      %426 = vmatpush.bf16.msra.mxu0 %v402
      %427 = vmatpush.bf16.msra.mxu0 %v400
      %428 = vmatpush.bf16.msra.mxu0 %v398
      %429 = vmatpush.bf16.msra.mxu0 %v396
      %430 = vmatpush.bf16.msra.mxu0 %v394
      %431 = vmatpush.bf16.msra.mxu0 %v392
      %432 = vmatmul.bf16.gmra.mxu0 %v229
      %v433 = vpop.f32.mrf.mxu0
      %v434 = vadd.f32 %v328, %v433
      %v435 = vpop.f32.mrf.mxu0
      %436 = vdwg.mxu0
      %437 = vmatpush.bf16.msra.mxu0 %v407
      %438 = vmatpush.bf16.msra.mxu0 %v405
      %439 = vmatpush.bf16.msra.mxu0 %v403
      %440 = vmatpush.bf16.msra.mxu0 %v401
      %441 = vmatpush.bf16.msra.mxu0 %v399
      %442 = vmatpush.bf16.msra.mxu0 %v397
      %443 = vmatpush.bf16.msra.mxu0 %v395
      %444 = vmatpush.bf16.msra.mxu0 %v393
      %445 = vmatmul.bf16.gmra.mxu0 %v229
      %v446 = vpop.f32.mrf.mxu0
      %v447 = vadd.f32 %v341, %v446
      %v448 = vpop.f32.mrf.mxu0
      %449 = vdwg.mxu0
      %451 = vrot.lane.b32.xlu0 %v434, 72
      %v452 = vpop.permute.xlu0 %451
      %v454 = vmax.f32 %v434, %v452
      %456 = vrot.lane.b32.xlu0 %v447, 72
      %v457 = vpop.permute.xlu0 %456
      %v459 = vmax.f32 %v434, %v457
      %v460 = vmax.f32 %v447, %v457
      %463 = vrot.lane.b32.xlu0 %v459, 16
      %v464 = vpop.permute.xlu0 %463
      %465 = vrot.lane.b32.xlu0 %v460, 16
      %v466 = vpop.permute.xlu0 %465
      %vm467 = vcmask 130048
      %v468 = vsel %vm467, %v464, %v466
      %v470 = vmax.f32 %v454, %v468
      %v471 = vmax.f32 %v470, 0.0
      %v473 = vperm.slane %v226, 0
      %v475 = vmul.f32 %v471, %v473
      %v477 = vperm.slane %v227, 0
      %v479 = vadd.f32 %v475, %v477
      %vm480 = vcmask 456704
      %481 = vst.msk [vmem:[%s192] sm:$0x7f] %vm480, %v479
      %p482 = scmp.lt.s32.totalorder %s15, 1
      %s483 = scalar_select %p482, %s15, 1
      %s484 = smul.addr %s483, 8
      %s485 = scalar_lea.vmem %s4, %s484
      // Predicated region
      $region37: #{tpu_custom_call.1} parent=35 // pred_check
        %p486 = pneg %p122
      $region38: #{tpu_custom_call.1} parent=35 // pred_check_branch
        %488 = sbr.rel (%p486) target = $region40
      $region39: #{tpu_custom_call.1} parent=35 // pred_region
        _
      $region40: #{tpu_custom_call.1} parent=35 // pred_fallthru
        _
    $region36: #{tpu_custom_call.1} parent=5 // pred_fallthru
      _
    %p489 = scmp.le.s32.totalorder 2, %s10
    // Predicated region
    $region41: #{tpu_custom_call.1} parent=5 // pred_check
      %p490 = pneg %p489
    $region42: #{tpu_custom_call.1} parent=5 // pred_check_branch
      %492 = sbr.rel (%p490) target = $region44
    $region43: #{tpu_custom_call.1} parent=5 // pred_region
      %s493 = ssub.s32 %s10, 2
      // Predicated region
      $region45: #{tpu_custom_call.1} parent=43 // pred_check
        %p494 = pneg %p128
      $region46: #{tpu_custom_call.1} parent=43 // pred_check_branch
        %496 = sbr.rel (%p494) target = $region48
      $region47: #{tpu_custom_call.1} parent=43 // pred_region
        %p497 = scmp.lt.s32.totalorder %s16, 1
        %s498 = scalar_select %p497, %s16, 1
        %s499 = smul.addr %s498, 8
        %s500 = scalar_lea.vmem %s4, %s499
      $region48: #{tpu_custom_call.1} parent=43 // pred_fallthru
        _
    $region44: #{tpu_custom_call.1} parent=5 // pred_fallthru
      _
  $region6: #{tpu_custom_call.1} parent=0 // loop_footer
    %s14 = sadd.s32 1, %s10
  $region7: #{tpu_custom_call.1} parent=0 // loop_footer_branch
    %9 = sbr.rel target = $region3
  $region8: #{tpu_custom_call.1} parent=0 // loop_exit
    _

</llo_original>
